<compile_context>
chip_gen: v7x
topology: tpu7x:2x2x1
jax: 0.10.0
libtpu: 0.0.40
codegen_flags: <defaults>
</compile_context>

<pallas_src>
import math

import jax
import jax.numpy as jnp
from jax.experimental import pallas as pl
from jax.experimental.pallas import tpu as pltpu


def _round_up(x, m):
    return (x + m - 1) // m * m


def channel_dropout_kernel(x_ref, mask_ref, o_ref):
    # x_ref / o_ref: (tm, C) row tile streamed from/to HBM.
    # mask_ref: (1, C) keep-mask, constant index_map -> DMA'd once, VMEM-resident.
    o_ref[...] = x_ref[...] * mask_ref[...]


def channel_dropout_pallas(x, *, drop_prob: float, key, training: bool = True,
                           target_tile_bytes: int = 4 * 1024 * 1024):
    """ChannelDropout forward for x of any shape (..., C)."""
    if (not training) or drop_prob == 0.0:
        return x  # module's early return: no kernel launch

    orig_shape = x.shape
    C = orig_shape[-1]
    M = math.prod(orig_shape[:-1]) if len(orig_shape) > 1 else 1
    x2 = x.reshape(M, C)

    # Per-channel keep mask, exactly the module's (rand(C) > p).float() (no 1/(1-p) rescale).
    # TODO(synk): distribution matches Bernoulli(1-p) per channel, but the exact bits differ
    # from torch's CPU RNG stream (jax.random vs torch.rand).
    mask = (jax.random.uniform(key, (1, C), jnp.float32) > drop_prob).astype(x.dtype)

    itemsize = x2.dtype.itemsize
    sub = max(8, 32 // itemsize)          # sublane multiple: 8 f32, 16 bf16, 32 int8/fp8

    if M <= sub:
        tm = M                            # block == full first dim -> always legal
    else:
        row_bytes = C * itemsize
        tm = max(sub, (target_tile_bytes // max(row_bytes, 1)) // sub * sub)
        # keep >= 2 grid steps so v7x's two TensorCores both stream (harmless on v5e/v6e)
        tm = min(tm, _round_up(pl.cdiv(M, 2), sub))
        tm = min(tm, _round_up(M, sub))
    grid_m = pl.cdiv(M, tm)

    # Resident VMEM ~= 2 streams x 2 buffers x tile + mask; keep the scoped limit modest so
    # it fits v7x's 64 MiB physical VMEM while still covering v5e's 16 MiB default.
    tile_bytes = tm * C * itemsize
    vmem_limit = int(min(32 * 1024 * 1024,
                         max(16 * 1024 * 1024, 5 * tile_bytes + 2 * C * itemsize)))

    out = pl.pallas_call(
        channel_dropout_kernel,
        out_shape=jax.ShapeDtypeStruct((M, C), x.dtype),
        grid=(grid_m,),
        in_specs=[
            pl.BlockSpec((tm, C), lambda i: (i, 0)),   # streamed row tiles of x
            pl.BlockSpec((1, C), lambda i: (0, 0)),    # mask: fetched once, stays resident
        ],
        out_specs=pl.BlockSpec((tm, C), lambda i: (i, 0)),
        input_output_aliases={0: 0},                   # may overwrite x's buffer in place
        compiler_params=pltpu.CompilerParams(
            dimension_semantics=("parallel",),
            vmem_limit_bytes=vmem_limit,
        ),
    )(x2, mask)

    return out.reshape(orig_shape)


if __name__ == "__main__":
    key = jax.random.PRNGKey(0)
    kx1, km1, kx2, km2, kx3, km3 = jax.random.split(key, 6)

    # ---- main case: lane-dense channels (C = 256), several row tiles ----
    x1 = jax.random.normal(kx1, (2, 8, 16, 256), jnp.float32)
    y1 = jax.block_until_ready(channel_dropout_pallas(x1, drop_prob=0.3, key=km1))
    mask1 = (jax.random.uniform(km1, (1, 256), jnp.float32) > 0.3).astype(x1.dtype)
    assert y1.shape == x1.shape
    assert bool(jnp.all(y1 == x1 * mask1[0]))           # exact: y == x * mask
    kept1 = int(jnp.sum(mask1))
    assert 0 < kept1 < 256                               # some channels kept, some dropped

    # ---- small channel count (C = 16, not a multiple of 128; no padding round-trip) ----
    x2 = jax.random.normal(kx2, (2, 4, 16), jnp.float32)
    y2 = jax.block_until_ready(channel_dropout_pallas(x2, drop_prob=0.5, key=km2))
    mask2 = (jax.random.uniform(km2, (1, 16), jnp.float32) > 0.5).astype(x2.dtype)
    assert y2.shape == x2.shape
    assert bool(jnp.all(y2 == x2 * mask2[0]))

    # ---- bf16, ragged row count (M = 35), ragged last grid block ----
    x3 = jax.random.normal(kx3, (5, 7, 48), jnp.float32).astype(jnp.bfloat16)
    y3 = jax.block_until_ready(channel_dropout_pallas(x3, drop_prob=0.4, key=km3))
    mask3 = (jax.random.uniform(km3, (1, 48), jnp.float32) > 0.4).astype(x3.dtype)
    assert y3.shape == x3.shape
    assert bool(jnp.all(y3 == x3 * mask3[0]))

    # ---- eval mode / drop_prob == 0 -> identity, no kernel launch ----
    y4 = channel_dropout_pallas(x1, drop_prob=0.3, key=km1, training=False)
    y5 = channel_dropout_pallas(x1, drop_prob=0.0, key=km1, training=True)
    assert bool(jnp.all(y4 == x1)) and bool(jnp.all(y5 == x1))

    print("KERNEL_OK")
</pallas_src>

<mosaic_0001>
module attributes {stable_mosaic.version = 11 : i64} {
  func.func @channel_dropout_kernel(%arg0: i32, %arg1: memref<128x256xf32, #tpu.memory_space<vmem>>, %arg2: memref<1x256xf32, #tpu.memory_space<vmem>>, %arg3: memref<128x256xf32, #tpu.memory_space<vmem>>) attributes {dimension_semantics = [#tpu.dimension_semantics<parallel>], iteration_bounds = array<i64: 2>, scalar_prefetch = 0 : i64, scratch_operands = 0 : i64, tpu.core_type = #tpu.core_type<tc>, window_params = [{transform_indices = @transform_0, window_bounds = array<i64: 128, 256>}, {pipeline_mode = #tpu.pipeline_mode<synchronous>, transform_indices = @transform_1, window_bounds = array<i64: 1, 256>}, {transform_indices = @transform_2, window_bounds = array<i64: 128, 256>}]} {
    %c0 = arith.constant 0 : index
    %c0_0 = arith.constant 0 : index
    %0 = vector.load %arg1[%c0, %c0_0] : memref<128x256xf32, #tpu.memory_space<vmem>>, vector<128x256xf32>
    %c0_1 = arith.constant 0 : index
    %c0_2 = arith.constant 0 : index
    %1 = vector.load %arg2[%c0_1, %c0_2] : memref<1x256xf32, #tpu.memory_space<vmem>>, vector<1x256xf32>
    %2 = vector.broadcast %1 : vector<1x256xf32> to vector<128x256xf32>
    %3 = arith.mulf %0, %2 : vector<128x256xf32>
    %c0_3 = arith.constant 0 : index
    %c0_4 = arith.constant 0 : index
    %4 = vector.load %arg3[%c0_3, %c0_4] : memref<128x256xf32, #tpu.memory_space<vmem>>, vector<128x256xf32>
    tpu.vector_store %arg3[%c0_3, %c0_4], %3 {strides = array<i32>} : memref<128x256xf32, #tpu.memory_space<vmem>>, vector<128x256xf32>,
    return
  }
  func.func @transform_0(%arg0: i32) -> (i32, i32) {
    %c0_i32 = arith.constant 0 : i32
    %c0_i32_0 = arith.constant 0 : i32
    return %arg0, %c0_i32 : i32, i32
  }
  func.func @transform_1(%arg0: i32) -> (i32, i32) {
    %c0_i32 = arith.constant 0 : i32
    %c0_i32_0 = arith.constant 0 : i32
    %c0_i32_1 = arith.constant 0 : i32
    return %c0_i32, %c0_i32_0 : i32, i32
  }
  func.func @transform_2(%arg0: i32) -> (i32, i32) {
    %c0_i32 = arith.constant 0 : i32
    %c0_i32_0 = arith.constant 0 : i32
    return %arg0, %c0_i32 : i32, i32
  }
}

</mosaic_0001>

<llo_original>
// kernel: tpu_custom_call.1
$region0: #{tpu_custom_call.1}
  #allocation0 [shape = 'u32[]', space=smem, size = 0x4, offset = 0x4, fixed_abs, tag = 'smem constant byte address 0x4 - core index']
  #allocation1 [shape = 'u32[144,128]{1,0:T(1,128)}', space=vmem, size = 0x12000, scoped, tag = 'internal scratch']
  %s0 = inlined_call_operand.hbm [shape: f32[256,256], index: 0, kind: input, shape index: {}, may-alias: {0,2}]
  %s1 = inlined_call_operand.vmem [shape: f32[1,256], index: 1, kind: input, shape index: {}]
  %s2 = inlined_call_operand.hbm [shape: f32[256,256], index: 2, kind: output, shape index: {}, may-alias: {0,2}]
  %s3 = sld [smem:[#allocation0]]
  $region45: #{tpu_custom_call.1} parent=0
    _
  %s5 = ssub.s32 1, %s3
  %s6 = scalar_select 0, %s5, %s3
  $region1: #{tpu_custom_call.1} parent=0
    #allocation2 [shape = 'u8[262144]{0}', space=vmem, size = 0x40000, scoped, tag = 'input window, operand 0']
    #allocation3 [shape = 's32[2]{0}', space=sflag, size = 0x8, scoped, tag = 'scoped memory for tpu_custom_call.1']
    #allocation4 [shape = 's32[2]{0}', space=sflag, size = 0x8, scoped, tag = 'scoped memory for tpu_custom_call.1']
    #allocation5 [shape = 'u8[262144]{0}', space=vmem, size = 0x40000, scoped, tag = 'output window, operand 0']
    %7 = vsyncpa [#allocation3], 0
    %s8 = scalar_lea.sflag [#allocation3], 1
    %9 = vsyncpa %s8, 0
    %10 = vsyncpa [#allocation4], 0
    %s11 = scalar_lea.sflag [#allocation4], 1
    %12 = vsyncpa %s11, 0
    loop: start=0, step=1, limit=4
    $region2: #{tpu_custom_call.1} parent=1 // loop_pre_header
      _
    $region3: #{tpu_custom_call.1} parent=1 // loop_header
      %s14 = sphi 0, %s18
      %p15 = scmp.ge.s32.totalorder %s14, 4
      %s24 = sphi 0, %s26
      %s27 = sphi 0, %s24
      %s28 = sphi 0, %s27
      %s44 = sphi 0, %s28
      %s48 = sphi 0, %s48
      %s50 = sphi 0, %s48
      %s51 = sphi 0, %s50
      %s65 = sphi 0, %s51
      %s71 = sphi 0, %s73
      %s74 = sphi 0, %s71
      %s75 = sphi 0, %s74
      %s91 = sphi 0, %s75
    $region4: #{tpu_custom_call.1} parent=1 // loop_header_branch
      %17 = sbr.rel (%p15) target = $region8
    $region5: #{tpu_custom_call.1} parent=1 // loop_body
      %s19 = ssub.s32 %s14, 1
      %s20 = ssub.s32 %s14, 2
      %s21 = sadd.s32 %s14, 1
      %s22 = ssub.s32 %s14, %s21
      %p23 = scmp.eq.s32.totalorder %s22, 0
      %s25 = sadd.s32 %s24, 1
      %s26 = scalar_select %p23, %s24, %s25
      %p29 = pneg %p23
      %p30 = scmp.eq.s32.totalorder %s14, 1
      %p31 = por %p29, %p30
      %p32 = scmp.ne.s32.totalorder %s24, %s27
      %p33 = scmp.eq.s32.totalorder %s14, 0
      %p34 = por %p32, %p33
      %p35 = scmp.ne.s32.totalorder %s24, %s27
      %p36 = scmp.eq.s32.totalorder %s19, 1
      %p37 = por %p35, %p36
      %p38 = scmp.ne.s32.totalorder %s27, %s28
      %p39 = scmp.eq.s32.totalorder %s19, 0
      %p40 = por %p38, %p39
      %p41 = scmp.ne.s32.totalorder %s27, %s28
      %p42 = scmp.eq.s32.totalorder %s20, 1
      %p43 = por %p41, %p42
      %p45 = scmp.ne.s32.totalorder %s28, %s44
      %p46 = scmp.eq.s32.totalorder %s20, 0
      %p47 = por %p45, %p46
      %s49 = sadd.s32 %s48, 1
      %p52 = scmp.eq.s32.totalorder %s14, 1
      %p53 = scmp.ne.s32.totalorder %s48, %s50
      %p54 = scmp.eq.s32.totalorder %s14, 0
      %p55 = por %p53, %p54
      %p56 = scmp.ne.s32.totalorder %s48, %s50
      %p57 = scmp.eq.s32.totalorder %s19, 1
      %p58 = por %p56, %p57
      %p59 = scmp.ne.s32.totalorder %s50, %s51
      %p60 = scmp.eq.s32.totalorder %s19, 0
      %p61 = por %p59, %p60
      %p62 = scmp.ne.s32.totalorder %s50, %s51
      %p63 = scmp.eq.s32.totalorder %s20, 1
      %p64 = por %p62, %p63
      %p66 = scmp.ne.s32.totalorder %s51, %s65
      %p67 = scmp.eq.s32.totalorder %s20, 0
      %p68 = por %p66, %p67
      %s69 = ssub.s32 %s14, %s21
      %p70 = scmp.eq.s32.totalorder %s69, 0
      %s72 = sadd.s32 %s71, 1
      %s73 = scalar_select %p70, %s71, %s72
      %p76 = pneg %p70
      %p77 = scmp.eq.s32.totalorder %s14, 1
      %p78 = por %p76, %p77
      %p79 = scmp.ne.s32.totalorder %s71, %s74
      %p80 = scmp.eq.s32.totalorder %s14, 0
      %p81 = por %p79, %p80
      %p82 = scmp.ne.s32.totalorder %s71, %s74
      %p83 = scmp.eq.s32.totalorder %s19, 1
      %p84 = por %p82, %p83
      %p85 = scmp.ne.s32.totalorder %s74, %s75
      %p86 = scmp.eq.s32.totalorder %s19, 0
      %p87 = por %p85, %p86
      %p88 = scmp.ne.s32.totalorder %s74, %s75
      %p89 = scmp.eq.s32.totalorder %s20, 1
      %p90 = por %p88, %p89
      %p92 = scmp.ne.s32.totalorder %s75, %s91
      %p93 = scmp.eq.s32.totalorder %s20, 0
      %p94 = por %p92, %p93
      %p95 = scmp.le.s32.totalorder 1, %s14
      %p96 = scmp.lt.s32.totalorder %s14, 3
      %p97 = pnand %p95, %p96
      %p98 = pneg %p97
      // Predicated region
      $region9: #{tpu_custom_call.1} parent=5 // pred_check
        _
      $region10: #{tpu_custom_call.1} parent=5 // pred_check_branch
        %100 = sbr.rel (%p97) target = $region12
      $region11: #{tpu_custom_call.1} parent=5 // pred_region
        %s101 = ssub.s32 %s14, 1
        // Predicated region
        $region13: #{tpu_custom_call.1} parent=11 // pred_check
          %p102 = pneg %p61
        $region14: #{tpu_custom_call.1} parent=11 // pred_check_branch
          %104 = sbr.rel (%p102) target = $region16
        $region15: #{tpu_custom_call.1} parent=11 // pred_region
          _
        $region16: #{tpu_custom_call.1} parent=11 // pred_fallthru
          _
      $region12: #{tpu_custom_call.1} parent=5 // pred_fallthru
        _
      %p105 = scmp.lt.s32.totalorder %s14, 2
      // Predicated region
      $region17: #{tpu_custom_call.1} parent=5 // pred_check
        %p106 = pneg %p105
      $region18: #{tpu_custom_call.1} parent=5 // pred_check_branch
        %108 = sbr.rel (%p106) target = $region20
      $region19: #{tpu_custom_call.1} parent=5 // pred_region
        // Predicated region
        $region21: #{tpu_custom_call.1} parent=19 // pred_check
          %p109 = pneg %p34
        $region22: #{tpu_custom_call.1} parent=19 // pred_check_branch
          %111 = sbr.rel (%p109) target = $region24
        $region23: #{tpu_custom_call.1} parent=19 // pred_region
          %s112 = sand.u32 %s24, 1
          %s113 = scalar_lea.sflag [#allocation3], %s112
          %s114 = sand.u32 %s24, 1
          %s115 = smul.addr %s114, 256
          %s116 = scalar_lea.vmem [#allocation2], %s115
          %s117 = smul.u32 16, %s14
          %s119 = ssub.s32 4096, 4096
          %120 = vsyncadd %s113, %s119
          %s121 = smul.addr %s117, 2
          %s122 = smul.addr %s121, 128
          %s123 = scalar_lea.hbm %s0, %s122
          %s124 = sshll.u32 %s116, 4
          %s125 = int_to_ptr.vmem [resolvable:$true] %s124
          %130 = dma.hbm_to_vmem [thread:$0]  %s123, 4096, %s125, %s113, 256, 256, 16
        $region24: #{tpu_custom_call.1} parent=19 // pred_fallthru
          _
      $region20: #{tpu_custom_call.1} parent=5 // pred_fallthru
        _
      %p131 = scmp.le.s32.totalorder 1, %s14
      %p132 = scmp.lt.s32.totalorder %s14, 3
      %p133 = pnand %p131, %p132
      %p134 = pneg %p133
      // Predicated region
      $region25: #{tpu_custom_call.1} parent=5 // pred_check
        _
      $region26: #{tpu_custom_call.1} parent=5 // pred_check_branch
        %136 = sbr.rel (%p133) target = $region28
      $region27: #{tpu_custom_call.1} parent=5 // pred_region
        %s137 = ssub.s32 %s14, 1
        %s138 = sand.u32 %s27, 1
        %s139 = scalar_lea.sflag [#allocation3], %s138
        %s140 = sand.u32 %s27, 1
        %s141 = smul.addr %s140, 256
        %s142 = scalar_lea.vmem [#allocation2], %s141
        // Predicated region
        $region29: #{tpu_custom_call.1} parent=27 // pred_check
          %p143 = pneg %p40
        $region30: #{tpu_custom_call.1} parent=27 // pred_check_branch
          %145 = sbr.rel (%p143) target = $region32
        $region31: #{tpu_custom_call.1} parent=27 // pred_region
          %146 = dma.done %s139, 4096
        $region32: #{tpu_custom_call.1} parent=27 // pred_fallthru
          _
        %s147 = sand.u32 %s27, 1
        %s148 = scalar_lea.sflag [#allocation3], %s147
        %s149 = sand.u32 %s27, 1
        %s150 = smul.addr %s149, 256
        %s151 = scalar_lea.vmem [#allocation2], %s150
        %p152 = pneg %p40
        %p153 = pneg %p37
        %p154 = pneg %p61
        %p155 = pneg %p58
        %p156 = pneg %p87
        %p157 = pneg %p84
        %s158 = sand.u32 %s74, 1
        %s159 = scalar_lea.sflag [#allocation4], %s158
        %s160 = sand.u32 %s74, 1
        %s161 = smul.addr %s160, 256
        %s162 = scalar_lea.vmem [#allocation5], %s161
        %s163 = smul.u32 16, %s19
        %s164 = smul.u32 16, %s19
        %v165 = vld [vmem:[%s142] sm:$0xff]
        %v166 = vld [vmem:[%s142 + $0x8] sm:$0xff]
        %v167 = vld [vmem:[%s142 + $0x10] sm:$0xff]
        %v168 = vld [vmem:[%s142 + $0x18] sm:$0xff]
        %v169 = vld [vmem:[%s142 + $0x20] sm:$0xff]
        %v170 = vld [vmem:[%s142 + $0x28] sm:$0xff]
        %v171 = vld [vmem:[%s142 + $0x30] sm:$0xff]
        %v172 = vld [vmem:[%s142 + $0x38] sm:$0xff]
        %v173 = vld [vmem:[%s142 + $0x40] sm:$0xff]
        %v174 = vld [vmem:[%s142 + $0x48] sm:$0xff]
        %v175 = vld [vmem:[%s142 + $0x50] sm:$0xff]
        %v176 = vld [vmem:[%s142 + $0x58] sm:$0xff]
        %v177 = vld [vmem:[%s142 + $0x60] sm:$0xff]
        %v178 = vld [vmem:[%s142 + $0x68] sm:$0xff]
        %v179 = vld [vmem:[%s142 + $0x70] sm:$0xff]
        %v180 = vld [vmem:[%s142 + $0x78] sm:$0xff]
        %v181 = vld [vmem:[%s142 + $0x80] sm:$0xff]
        %v182 = vld [vmem:[%s142 + $0x88] sm:$0xff]
        %v183 = vld [vmem:[%s142 + $0x90] sm:$0xff]
        %v184 = vld [vmem:[%s142 + $0x98] sm:$0xff]
        %v185 = vld [vmem:[%s142 + $0xa0] sm:$0xff]
        %v186 = vld [vmem:[%s142 + $0xa8] sm:$0xff]
        %v187 = vld [vmem:[%s142 + $0xb0] sm:$0xff]
        %v188 = vld [vmem:[%s142 + $0xb8] sm:$0xff]
        %v189 = vld [vmem:[%s142 + $0xc0] sm:$0xff]
        %v190 = vld [vmem:[%s142 + $0xc8] sm:$0xff]
        %v191 = vld [vmem:[%s142 + $0xd0] sm:$0xff]
        %v192 = vld [vmem:[%s142 + $0xd8] sm:$0xff]
        %v193 = vld [vmem:[%s142 + $0xe0] sm:$0xff]
        %v194 = vld [vmem:[%s142 + $0xe8] sm:$0xff]
        %v195 = vld [vmem:[%s142 + $0xf0] sm:$0xff]
        %v196 = vld [vmem:[%s142 + $0xf8] sm:$0xff]
        %v197 = vld [vmem:[%s1] sm:$0x3]
        %v199 = vlaneseq
        %v200 = vshrl.u32 %v199, 7
        %v201 = vsub.s32 0, %v200
        %v202 = vrot.slane %v197, %v201
        %v203 = vlaneseq
        %v204 = vshrl.u32 %v203, 7
        %v205 = vsub.s32 1, %v204
        %v206 = vrot.slane %v197, %v205
        %v209 = vmul.f32 %v165, %v202
        %v210 = vmul.f32 %v166, %v206
        %v211 = vmul.f32 %v167, %v202
        %v212 = vmul.f32 %v168, %v206
        %v213 = vmul.f32 %v169, %v202
        %v214 = vmul.f32 %v170, %v206
        %v215 = vmul.f32 %v171, %v202
        %v216 = vmul.f32 %v172, %v206
        %v217 = vmul.f32 %v173, %v202
        %v218 = vmul.f32 %v174, %v206
        %v219 = vmul.f32 %v175, %v202
        %v220 = vmul.f32 %v176, %v206
        %v221 = vmul.f32 %v177, %v202
        %v222 = vmul.f32 %v178, %v206
        %v223 = vmul.f32 %v179, %v202
        %v224 = vmul.f32 %v180, %v206
        %v225 = vmul.f32 %v181, %v202
        %v226 = vmul.f32 %v182, %v206
        %v227 = vmul.f32 %v183, %v202
        %v228 = vmul.f32 %v184, %v206
        %v229 = vmul.f32 %v185, %v202
        %v230 = vmul.f32 %v186, %v206
        %v231 = vmul.f32 %v187, %v202
        %v232 = vmul.f32 %v188, %v206
        %v233 = vmul.f32 %v189, %v202
        %v234 = vmul.f32 %v190, %v206
        %v235 = vmul.f32 %v191, %v202
        %v236 = vmul.f32 %v192, %v206
        %v237 = vmul.f32 %v193, %v202
        %v238 = vmul.f32 %v194, %v206
        %v239 = vmul.f32 %v195, %v202
        %v240 = vmul.f32 %v196, %v206
        %241 = vst [vmem:[%s162] sm:$0xff] %v209
        %242 = vst [vmem:[%s162 + $0x8] sm:$0xff] %v210
        %243 = vst [vmem:[%s162 + $0x10] sm:$0xff] %v211
        %244 = vst [vmem:[%s162 + $0x18] sm:$0xff] %v212
        %245 = vst [vmem:[%s162 + $0x20] sm:$0xff] %v213
        %246 = vst [vmem:[%s162 + $0x28] sm:$0xff] %v214
        %247 = vst [vmem:[%s162 + $0x30] sm:$0xff] %v215
        %248 = vst [vmem:[%s162 + $0x38] sm:$0xff] %v216
        %249 = vst [vmem:[%s162 + $0x40] sm:$0xff] %v217
        %250 = vst [vmem:[%s162 + $0x48] sm:$0xff] %v218
        %251 = vst [vmem:[%s162 + $0x50] sm:$0xff] %v219
        %252 = vst [vmem:[%s162 + $0x58] sm:$0xff] %v220
        %253 = vst [vmem:[%s162 + $0x60] sm:$0xff] %v221
        %254 = vst [vmem:[%s162 + $0x68] sm:$0xff] %v222
        %255 = vst [vmem:[%s162 + $0x70] sm:$0xff] %v223
        %256 = vst [vmem:[%s162 + $0x78] sm:$0xff] %v224
        %257 = vst [vmem:[%s162 + $0x80] sm:$0xff] %v225
        %258 = vst [vmem:[%s162 + $0x88] sm:$0xff] %v226
        %259 = vst [vmem:[%s162 + $0x90] sm:$0xff] %v227
        %260 = vst [vmem:[%s162 + $0x98] sm:$0xff] %v228
        %261 = vst [vmem:[%s162 + $0xa0] sm:$0xff] %v229
        %262 = vst [vmem:[%s162 + $0xa8] sm:$0xff] %v230
        %263 = vst [vmem:[%s162 + $0xb0] sm:$0xff] %v231
        %264 = vst [vmem:[%s162 + $0xb8] sm:$0xff] %v232
        %265 = vst [vmem:[%s162 + $0xc0] sm:$0xff] %v233
        %266 = vst [vmem:[%s162 + $0xc8] sm:$0xff] %v234
        %267 = vst [vmem:[%s162 + $0xd0] sm:$0xff] %v235
        %268 = vst [vmem:[%s162 + $0xd8] sm:$0xff] %v236
        %269 = vst [vmem:[%s162 + $0xe0] sm:$0xff] %v237
        %270 = vst [vmem:[%s162 + $0xe8] sm:$0xff] %v238
        %271 = vst [vmem:[%s162 + $0xf0] sm:$0xff] %v239
        %272 = vst [vmem:[%s162 + $0xf8] sm:$0xff] %v240
        %s273 = sand.u32 %s74, 1
        %s274 = scalar_lea.sflag [#allocation4], %s273
        %s275 = sand.u32 %s74, 1
        %s276 = smul.addr %s275, 256
        %s277 = scalar_lea.vmem [#allocation5], %s276
        // Predicated region
        $region33: #{tpu_custom_call.1} parent=27 // pred_check
          %p278 = pneg %p84
        $region34: #{tpu_custom_call.1} parent=27 // pred_check_branch
          %280 = sbr.rel (%p278) target = $region36
        $region35: #{tpu_custom_call.1} parent=27 // pred_region
          %s281 = smul.u32 16, %s19
          %s283 = ssub.s32 4096, 4096
          %284 = vsyncadd %s274, %s283
          %s285 = smul.addr %s281, 2
          %s286 = smul.addr %s285, 128
          %s287 = scalar_lea.hbm %s2, %s286
          %s288 = sshll.u32 %s277, 4
          %s289 = int_to_ptr.vmem [resolvable:$true] %s288
          %294 = dma.vmem_to_hbm [thread:$0]  %s289, 4096, %s287, %s274, 256, 256, 16
        $region36: #{tpu_custom_call.1} parent=27 // pred_fallthru
          _
      $region28: #{tpu_custom_call.1} parent=5 // pred_fallthru
        _
      %p295 = scmp.le.s32.totalorder 2, %s14
      // Predicated region
      $region37: #{tpu_custom_call.1} parent=5 // pred_check
        %p296 = pneg %p295
      $region38: #{tpu_custom_call.1} parent=5 // pred_check_branch
        %298 = sbr.rel (%p296) target = $region40
      $region39: #{tpu_custom_call.1} parent=5 // pred_region
        %s299 = ssub.s32 %s14, 2
        // Predicated region
        $region41: #{tpu_custom_call.1} parent=39 // pred_check
          %p300 = pneg %p90
        $region42: #{tpu_custom_call.1} parent=39 // pred_check_branch
          %302 = sbr.rel (%p300) target = $region44
        $region43: #{tpu_custom_call.1} parent=39 // pred_region
          %s303 = sand.u32 %s75, 1
          %s304 = scalar_lea.sflag [#allocation4], %s303
          %s305 = sand.u32 %s75, 1
          %s306 = smul.addr %s305, 256
          %s307 = scalar_lea.vmem [#allocation5], %s306
          %308 = dma.done %s304, 4096
        $region44: #{tpu_custom_call.1} parent=39 // pred_fallthru
          _
      $region40: #{tpu_custom_call.1} parent=5 // pred_fallthru
        _
    $region6: #{tpu_custom_call.1} parent=1 // loop_footer
      %s18 = sadd.s32 1, %s14
    $region7: #{tpu_custom_call.1} parent=1 // loop_footer_branch
      %13 = sbr.rel target = $region3
    $region8: #{tpu_custom_call.1} parent=1 // loop_exit
      _
    %309 = vsyncpa [#allocation3], 1
    %s310 = scalar_lea.sflag [#allocation3], 1
    %311 = vsyncpa %s310, 1
    %312 = vsyncpa [#allocation4], 1
    %s313 = scalar_lea.sflag [#allocation4], 1
    %314 = vsyncpa %s313, 1

</llo_original>
